<compile_context>
chip_gen: v5e
topology: v5e:2x2
jax: 0.10.0
libtpu: 0.0.40
codegen_flags: <defaults>
</compile_context>

<pallas_src>
import functools

import jax
import jax.numpy as jnp
from jax.experimental import pallas as pl
from jax.experimental.pallas import tpu as pltpu


def _round_up(x: int, m: int) -> int:
    return ((x + m - 1) // m) * m


def _pick_tile(dim: int, gran: int, cap: int) -> int:
    """Largest divisor of `dim` that is a multiple of `gran` and <= cap.
    `dim` must be a multiple of `gran` (so gran itself always works)."""
    d = max(1, cap // gran)
    while d >= 1:
        t = d * gran
        if dim % t == 0:
            return t
        d -= 1
    return gran


def _resblock_kernel(*refs, residual: bool):
    if residual:
        x_ref, wt_ref, b_ref, xres_ref, o_ref, acc_ref = refs
    else:
        x_ref, wt_ref, b_ref, o_ref, acc_ref = refs
        xres_ref = None

    k = pl.program_id(2)

    @pl.when(k == 0)
    def _init():
        # Fold the bias add into the accumulator init (saves an epilogue VPU add).
        acc_ref[...] = jnp.broadcast_to(b_ref[...], acc_ref.shape)

    # Hot loop: pure bf16 x bf16 MXU matmul, f32 accumulate. No casts in the loop.
    acc_ref[...] += jnp.dot(x_ref[...], wt_ref[...],
                            preferred_element_type=jnp.float32)

    @pl.when(k == pl.num_programs(2) - 1)
    def _epilogue():
        out = jnp.tanh(acc_ref[...])                 # EUP tanh, once per output tile
        if residual:                                 # static flag mirrors shape check
            out = out + xres_ref[...]                # skip-connection in f32
        o_ref[...] = out.astype(o_ref.dtype)


def init_resblock_params(key, in_features, out_features):
    """Xavier-uniform weight + zero bias (matches ResBlock.init_weights)."""
    bound = jnp.sqrt(6.0 / (in_features + out_features))
    weight = jax.random.uniform(
        key, (out_features, in_features), dtype=jnp.float32,
        minval=-bound, maxval=bound,
    )
    bias = jnp.zeros((out_features,), dtype=jnp.float32)
    return weight, bias


def prepare_resblock(weight, bias):
    """One-time prep (amortized): transpose weight to (in, out), cast to bf16,
    zero-pad features to 128-lane multiples only; pad bias likewise."""
    out_f, in_f = weight.shape
    residual = (out_f == in_f)
    pad_out = _round_up(out_f, 128)
    pad_in = _round_up(in_f, 128)

    # Padded K rows of W^T must be zero so they contribute nothing to real outputs.
    wt = jnp.zeros((pad_in, pad_out), jnp.bfloat16)
    wt = wt.at[:in_f, :out_f].set(weight.T.astype(jnp.bfloat16))
    b = jnp.zeros((1, pad_out), jnp.float32)
    b = b.at[0, :out_f].set(bias.astype(jnp.float32))

    return dict(wt=wt, b=b, in_features=in_f, out_features=out_f,
                residual=residual, pad_in=pad_in, pad_out=pad_out)


def resblock_forward(params, x, *, tm_cap=512, tn_cap=512, tk_cap=1024):
    """x: (B, in_features) float32 -> (B, out_features) float32."""
    B, in_f = x.shape
    assert in_f == params["in_features"], (in_f, params["in_features"])
    pad_in, pad_out = params["pad_in"], params["pad_out"]
    residual = params["residual"]
    out_f = params["out_features"]

    # Pad batch only to the 8-sublane granularity; tiles divide the padded dims exactly.
    pad_B = _round_up(B, 8)
    tm = _pick_tile(pad_B, 8, tm_cap)
    tn = _pick_tile(pad_out, 128, tn_cap)
    tk = _pick_tile(pad_in, 128, tk_cap)

    # Megacore (v7x has 2 TCs): make sure at least one "parallel" axis has extent >= 2
    # when the problem allows it.
    if pad_B // tm == 1 and pad_out // tn == 1:
        if pad_B // 8 >= 2:
            tm = _pick_tile(pad_B, 8, max(8, pad_B // 2))
        elif pad_out // 128 >= 2:
            tn = _pick_tile(pad_out, 128, max(128, pad_out // 2))

    # x for the MXU: bf16, K-padding MUST be zeros (it feeds the reduction).
    if pad_B == B and pad_in == in_f:
        x_bf = x.astype(jnp.bfloat16)                       # no extra pad pass
    else:
        x_bf = jnp.pad(x.astype(jnp.bfloat16),              # pad fused with the cast
                       ((0, pad_B - B), (0, pad_in - in_f)))

    inputs = [x_bf, params["wt"], params["b"]]
    in_specs = [
        pl.BlockSpec((tm, tk), lambda i, j, k: (i, k)),     # x (bf16 matmul operand)
        pl.BlockSpec((tk, tn), lambda i, j, k: (k, j)),     # W^T (bf16, streamed)
        pl.BlockSpec((1, tn), lambda i, j, k: (0, j)),      # bias (f32, k-invariant)
    ]
    if residual:
        # Keep the skip-connection in f32 (pad values don't matter: rows/cols sliced off).
        if pad_B == B and pad_out == in_f:
            x_res = x
        else:
            x_res = jnp.pad(x, ((0, pad_B - B), (0, pad_out - in_f)))
        inputs.append(x_res)
        in_specs.append(pl.BlockSpec((tm, tn), lambda i, j, k: (i, j)))

    grid = (pad_B // tm, pad_out // tn, pad_in // tk)

    # VMEM budget (double-buffered inputs/outputs + f32 accumulator), capped for v7x.
    buf_bytes = 2 * (tm * tk * 2 + tk * tn * 2 + tn * 4 + tm * tn * 4)
    if residual:
        buf_bytes += 2 * tm * tn * 4
    buf_bytes += tm * tn * 4
    vmem_limit = min(48 * 1024 * 1024, max(32 * 1024 * 1024, 2 * buf_bytes))

    flops = 2 * pad_B * pad_in * pad_out
    bytes_accessed = (x_bf.size * 2 * (pad_out // tn)       # x re-streamed per N tile
                      + params["wt"].size * 2 * (pad_B // tm)
                      + params["b"].size * 4
                      + (x_res.size * 4 if residual else 0)
                      + pad_B * pad_out * 4)

    out = pl.pallas_call(
        functools.partial(_resblock_kernel, residual=residual),
        out_shape=jax.ShapeDtypeStruct((pad_B, pad_out), jnp.float32),
        grid_spec=pltpu.PrefetchScalarGridSpec(
            num_scalar_prefetch=0,
            grid=grid,
            in_specs=in_specs,
            out_specs=pl.BlockSpec((tm, tn), lambda i, j, k: (i, j)),
            scratch_shapes=[pltpu.VMEM((tm, tn), jnp.float32)],
        ),
        compiler_params=pltpu.CompilerParams(
            dimension_semantics=("parallel", "parallel", "arbitrary"),
            vmem_limit_bytes=vmem_limit,
        ),
        cost_estimate=pl.CostEstimate(
            flops=flops,
            transcendentals=pad_B * pad_out,
            bytes_accessed=bytes_accessed,
        ),
    )(*inputs)

    return out[:B, :out_f]


# ---------------------------------------------------------------------------
# References
def resblock_reference(x, weight, bias):
    out = jnp.tanh(x @ weight.T + bias)
    if out.shape == x.shape:
        out = out + x
    return out


def resblock_reference_bf16(x, weight, bias):
    out = jnp.dot(x.astype(jnp.bfloat16), weight.T.astype(jnp.bfloat16),
                  preferred_element_type=jnp.float32) + bias
    out = jnp.tanh(out)
    if out.shape == x.shape:
        out = out + x
    return out


if __name__ == "__main__":
    def run_case(key, B, in_f, out_f, **caps):
        k_x, k_w = jax.random.split(key)
        x = jax.random.normal(k_x, (B, in_f), dtype=jnp.float32)
        weight, bias = init_resblock_params(k_w, in_f, out_f)
        params = prepare_resblock(weight, bias)
        out = jax.block_until_ready(resblock_forward(params, x, **caps))

        ref_f32 = resblock_reference(x, weight, bias)
        ref_bf16 = resblock_reference_bf16(x, weight, bias)
        assert out.shape == ref_f32.shape, (out.shape, ref_f32.shape)
        assert jnp.allclose(out, ref_bf16, atol=2e-3, rtol=2e-3), "mismatch vs bf16 reference"
        assert jnp.allclose(out, ref_f32, atol=6e-2, rtol=6e-2), "mismatch vs f32 reference"

    k1, k2, k3 = jax.random.split(jax.random.PRNGKey(0), 3)
    # Small case matching module usage (in == out -> residual taken), padded to 128 lanes.
    run_case(k1, 8, 32, 32)
    # Multi-tile grid (2,2,2): exercises K accumulation + epilogue + residual, aligned
    # shapes take the no-copy bf16-cast path.
    run_case(k2, 64, 256, 256, tm_cap=32, tn_cap=128, tk_cap=128)
    # Non-residual path (out_features != in_features) with padding, output slicing, and
    # the forced M split for megacore.
    run_case(k3, 16, 96, 48)

    print("KERNEL_OK")
</pallas_src>

<mosaic_0001>
module attributes {stable_mosaic.version = 11 : i64} {
  func.func @_resblock_kernel(%arg0: i32, %arg1: i32, %arg2: i32, %arg3: memref<8x128xbf16, #tpu.memory_space<vmem>>, %arg4: memref<128x128xbf16, #tpu.memory_space<vmem>>, %arg5: memref<1x128xf32, #tpu.memory_space<vmem>>, %arg6: memref<8x128xf32, #tpu.memory_space<vmem>>, %arg7: memref<8x128xf32, #tpu.memory_space<vmem>>, %arg8: memref<8x128xf32, #tpu.memory_space<vmem>>) attributes {dimension_semantics = [#tpu.dimension_semantics<parallel>, #tpu.dimension_semantics<parallel>, #tpu.dimension_semantics<arbitrary>], iteration_bounds = array<i64: 1, 1, 1>, scalar_prefetch = 0 : i64, scratch_operands = 1 : i64, tpu.core_type = #tpu.core_type<tc>, window_params = [{transform_indices = @transform_0, window_bounds = array<i64: 8, 128>}, {transform_indices = @transform_1, window_bounds = array<i64: 128, 128>}, {transform_indices = @transform_2, window_bounds = array<i64: 1, 128>}, {transform_indices = @transform_3, window_bounds = array<i64: 8, 128>}, {transform_indices = @transform_4, window_bounds = array<i64: 8, 128>}]} {
    %c0_i32 = arith.constant 0 : i32
    %0 = arith.cmpi eq, %arg2, %c0_i32 : i32
    %1 = arith.extui %0 : i1 to i32
    %c0_i32_0 = arith.constant 0 : i32
    %2 = arith.cmpi ne, %1, %c0_i32_0 : i32
    scf.if %2 {
      %c0_10 = arith.constant 0 : index
      %c0_11 = arith.constant 0 : index
      %12 = vector.load %arg5[%c0_10, %c0_11] : memref<1x128xf32, #tpu.memory_space<vmem>>, vector<1x128xf32>
      %13 = vector.shape_cast %12 : vector<1x128xf32> to vector<1x128xf32>
      %14 = vector.broadcast %13 : vector<1x128xf32> to vector<8x128xf32>
      %c0_12 = arith.constant 0 : index
      %c0_13 = arith.constant 0 : index
      %15 = vector.load %arg8[%c0_12, %c0_13] : memref<8x128xf32, #tpu.memory_space<vmem>>, vector<8x128xf32>
      tpu.vector_store %arg8[%c0_12, %c0_13], %14 {strides = array<i32>} : memref<8x128xf32, #tpu.memory_space<vmem>>, vector<8x128xf32>,
    } else {
    }
    %c0 = arith.constant 0 : index
    %c0_1 = arith.constant 0 : index
    %3 = vector.load %arg8[%c0, %c0_1] : memref<8x128xf32, #tpu.memory_space<vmem>>, vector<8x128xf32>
    %c0_2 = arith.constant 0 : index
    %c0_3 = arith.constant 0 : index
    %4 = vector.load %arg3[%c0_2, %c0_3] : memref<8x128xbf16, #tpu.memory_space<vmem>>, vector<8x128xbf16>
    %c0_4 = arith.constant 0 : index
    %c0_5 = arith.constant 0 : index
    %5 = vector.load %arg4[%c0_4, %c0_5] : memref<128x128xbf16, #tpu.memory_space<vmem>>, vector<128x128xbf16>
    %cst = arith.constant dense<0.000000e+00> : vector<8x128xf32>
    %6 = tpu.matmul %4, %5, %cst {dimension_numbers = #tpu.dot_dimension_numbers<[1], [0], [0], [1], [0, 0, 1, 1], [], []>} : vector<8x128xbf16>, vector<128x128xbf16>, vector<8x128xf32> -> vector<8x128xf32>
    %7 = arith.addf %3, %6 : vector<8x128xf32>
    %c0_6 = arith.constant 0 : index
    %c0_7 = arith.constant 0 : index
    %8 = vector.load %arg8[%c0_6, %c0_7] : memref<8x128xf32, #tpu.memory_space<vmem>>, vector<8x128xf32>
    tpu.vector_store %arg8[%c0_6, %c0_7], %7 {strides = array<i32>} : memref<8x128xf32, #tpu.memory_space<vmem>>, vector<8x128xf32>,
    %c0_i32_8 = arith.constant 0 : i32
    %9 = arith.cmpi eq, %arg2, %c0_i32_8 : i32
    %10 = arith.extui %9 : i1 to i32
    %c0_i32_9 = arith.constant 0 : i32
    %11 = arith.cmpi ne, %10, %c0_i32_9 : i32
    scf.if %11 {
      %c0_10 = arith.constant 0 : index
      %c0_11 = arith.constant 0 : index
      %12 = vector.load %arg8[%c0_10, %c0_11] : memref<8x128xf32, #tpu.memory_space<vmem>>, vector<8x128xf32>
      %13 = math.tanh %12 : vector<8x128xf32>
      %c0_12 = arith.constant 0 : index
      %c0_13 = arith.constant 0 : index
      %14 = vector.load %arg6[%c0_12, %c0_13] : memref<8x128xf32, #tpu.memory_space<vmem>>, vector<8x128xf32>
      %15 = arith.addf %13, %14 : vector<8x128xf32>
      %c0_14 = arith.constant 0 : index
      %c0_15 = arith.constant 0 : index
      %16 = vector.load %arg7[%c0_14, %c0_15] : memref<8x128xf32, #tpu.memory_space<vmem>>, vector<8x128xf32>
      tpu.vector_store %arg7[%c0_14, %c0_15], %15 {strides = array<i32>} : memref<8x128xf32, #tpu.memory_space<vmem>>, vector<8x128xf32>,
    } else {
    }
    return
  }
  func.func @transform_0(%arg0: i32, %arg1: i32, %arg2: i32) -> (i32, i32) {
    %c0_i32 = arith.constant 0 : i32
    return %arg0, %arg2 : i32, i32
  }
  func.func @transform_1(%arg0: i32, %arg1: i32, %arg2: i32) -> (i32, i32) {
    %c0_i32 = arith.constant 0 : i32
    return %arg2, %arg1 : i32, i32
  }
  func.func @transform_2(%arg0: i32, %arg1: i32, %arg2: i32) -> (i32, i32) {
    %c0_i32 = arith.constant 0 : i32
    %c0_i32_0 = arith.constant 0 : i32
    return %c0_i32, %arg1 : i32, i32
  }
  func.func @transform_3(%arg0: i32, %arg1: i32, %arg2: i32) -> (i32, i32) {
    %c0_i32 = arith.constant 0 : i32
    return %arg0, %arg1 : i32, i32
  }
  func.func @transform_4(%arg0: i32, %arg1: i32, %arg2: i32) -> (i32, i32) {
    %c0_i32 = arith.constant 0 : i32
    return %arg0, %arg1 : i32, i32
  }
}

</mosaic_0001>

<llo_original>
// kernel: tpu_custom_call.1
$region0: #{tpu_custom_call.1}
  #allocation0 [shape = 'u32[]', space=smem, size = 0x4, offset = 0x4, fixed_abs, tag = 'smem constant byte address 0x4 - core index']
  #allocation1 [shape = 'u32[72,128]{1,0:T(1,128)}', space=vmem, size = 0x9000, scoped, tag = 'internal scratch']
  #allocation2 [shape = 'f32[8,128]{1,0:T(8,128)}', space=vmem, size = 0x1000, scoped, tag = 'scratch operand']
  %s0 = inlined_call_operand.hbm [shape: bf16[8,128], index: 0, kind: input, shape index: {}]
  %s1 = inlined_call_operand.hbm [shape: bf16[128,128], index: 1, kind: input, shape index: {}]
  %s2 = inlined_call_operand.vmem [shape: f32[1,128], index: 2, kind: input, shape index: {}]
  %s3 = inlined_call_operand.hbm [shape: f32[8,128], index: 3, kind: input, shape index: {}]
  %s4 = inlined_call_operand.hbm [shape: f32[8,128], index: 4, kind: output, shape index: {}]
  %s5 = sld [smem:[#allocation0]]
  $region46: #{tpu_custom_call.1} parent=0
    _
  %s7 = ssub.s32 1, %s5
  %s8 = scalar_select 0, %s7, %s5
  $region1: #{tpu_custom_call.1} parent=0
    #allocation3 [shape = 'u8[2048]{0}', space=vmem, size = 0x800, scoped, tag = 'input window, operand 0, single buffered']
    #allocation4 [shape = 's32[1]{0}', space=sflag, size = 0x4, scoped, tag = 'scoped memory for tpu_custom_call.1']
    #allocation5 [shape = 's32[1]{0}', space=sflag, size = 0x4, scoped, tag = 'scoped memory for tpu_custom_call.1']
    #allocation6 [shape = 'u8[32768]{0}', space=vmem, size = 0x8000, scoped, tag = 'input window, operand 1, single buffered']
    #allocation7 [shape = 's32[1]{0}', space=sflag, size = 0x4, scoped, tag = 'scoped memory for tpu_custom_call.1']
    #allocation8 [shape = 'u8[4096]{0}', space=vmem, size = 0x1000, scoped, tag = 'input window, operand 3, single buffered']
    #allocation9 [shape = 'u8[4096]{0}', space=vmem, size = 0x1000, scoped, tag = 'output window, operand 0, single buffered']
    %9 = vsyncpa [#allocation4], 0
    %10 = vsyncpa [#allocation7], 0
    %11 = vsyncpa [#allocation5], 0
    // Predicated region
    $region2: #{tpu_custom_call.1} parent=1 // pred_check
      _
    $region3: #{tpu_custom_call.1} parent=1 // pred_check_branch
      %13 = sbr.rel (0) target = $region5
    $region4: #{tpu_custom_call.1} parent=1 // pred_region
      %15 = vsyncadd [#allocation4], 0
      %s17 = sshll.u32 %s0, 4
      %s18 = int_to_ptr.hbm [resolvable:$true] %s17
      %s19 = sshll.u32 [#allocation3], 4
      %s20 = int_to_ptr.vmem [resolvable:$true] %s19
      %22 = dma.hbm_to_vmem [thread:$0]  %s18, 64, %s20, [#allocation4]
    $region5: #{tpu_custom_call.1} parent=1 // pred_fallthru
      _
    // Predicated region
    $region6: #{tpu_custom_call.1} parent=1 // pred_check
      _
    $region7: #{tpu_custom_call.1} parent=1 // pred_check_branch
      %24 = sbr.rel (0) target = $region9
    $region8: #{tpu_custom_call.1} parent=1 // pred_region
      %26 = vsyncadd [#allocation7], 0
      %s27 = sshll.u32 %s1, 4
      %s28 = int_to_ptr.hbm [resolvable:$true] %s27
      %s29 = sshll.u32 [#allocation6], 4
      %s30 = int_to_ptr.vmem [resolvable:$true] %s29
      %35 = dma.hbm_to_vmem [thread:$0]  %s28, 1024, %s30, [#allocation7], 64, 64, 4
    $region9: #{tpu_custom_call.1} parent=1 // pred_fallthru
      _
    // Predicated region
    $region10: #{tpu_custom_call.1} parent=1 // pred_check
      _
    $region11: #{tpu_custom_call.1} parent=1 // pred_check_branch
      %37 = sbr.rel (0) target = $region13
    $region12: #{tpu_custom_call.1} parent=1 // pred_region
      _
    $region13: #{tpu_custom_call.1} parent=1 // pred_fallthru
      _
    // Predicated region
    $region14: #{tpu_custom_call.1} parent=1 // pred_check
      _
    $region15: #{tpu_custom_call.1} parent=1 // pred_check_branch
      %39 = sbr.rel (0) target = $region17
    $region16: #{tpu_custom_call.1} parent=1 // pred_region
      %41 = vsyncadd [#allocation7], 0
      %s43 = sshll.u32 %s3, 4
      %s44 = int_to_ptr.hbm [resolvable:$true] %s43
      %s45 = sshll.u32 [#allocation8], 4
      %s46 = int_to_ptr.vmem [resolvable:$true] %s45
      %48 = dma.hbm_to_vmem [thread:$0]  %s44, 128, %s46, [#allocation7]
    $region17: #{tpu_custom_call.1} parent=1 // pred_fallthru
      _
    // Predicated region
    $region18: #{tpu_custom_call.1} parent=1 // pred_check
      _
    $region19: #{tpu_custom_call.1} parent=1 // pred_check_branch
      %50 = sbr.rel (0) target = $region21
    $region20: #{tpu_custom_call.1} parent=1 // pred_region
      %52 = dma.done [#allocation4], 64
    $region21: #{tpu_custom_call.1} parent=1 // pred_fallthru
      _
    // Predicated region
    $region22: #{tpu_custom_call.1} parent=1 // pred_check
      _
    $region23: #{tpu_custom_call.1} parent=1 // pred_check_branch
      %54 = sbr.rel (0) target = $region25
    $region24: #{tpu_custom_call.1} parent=1 // pred_region
      %56 = dma.done [#allocation7], 1024
    $region25: #{tpu_custom_call.1} parent=1 // pred_fallthru
      _
    // Predicated region
    $region26: #{tpu_custom_call.1} parent=1 // pred_check
      _
    $region27: #{tpu_custom_call.1} parent=1 // pred_check_branch
      %58 = sbr.rel (0) target = $region29
    $region28: #{tpu_custom_call.1} parent=1 // pred_region
      %60 = dma.done [#allocation7], 128
    $region29: #{tpu_custom_call.1} parent=1 // pred_fallthru
      _
    %p61 = scmp.eq.s32.totalorder 0, 0
    // Predicated region
    $region30: #{tpu_custom_call.1} parent=1 // pred_check
      %p62 = pneg %p61
    $region31: #{tpu_custom_call.1} parent=1 // pred_check_branch
      %64 = sbr.rel (%p62) target = $region33
    $region32: #{tpu_custom_call.1} parent=1 // pred_region
      %v65 = vld [vmem:[%s2] sm:$0x1]
      %v67 = vperm.slane %v65, 0
      %69 = vst [vmem:[#allocation2] sm:$0xff] %v67
    $region33: #{tpu_custom_call.1} parent=1 // pred_fallthru
      _
    %v70 = vld [vmem:[#allocation2] sm:$0xff]
    %v71 = vld [vmem:[#allocation3] sm:$0xf]
    %v72 = vld [vmem:[#allocation6] sm:$0xf]
    %v73 = vld [vmem:[#allocation6 + $0x4] sm:$0xf]
    %v74 = vld [vmem:[#allocation6 + $0x8] sm:$0xf]
    %v75 = vld [vmem:[#allocation6 + $0xc] sm:$0xf]
    %v76 = vld [vmem:[#allocation6 + $0x10] sm:$0xf]
    %v77 = vld [vmem:[#allocation6 + $0x14] sm:$0xf]
    %v78 = vld [vmem:[#allocation6 + $0x18] sm:$0xf]
    %v79 = vld [vmem:[#allocation6 + $0x1c] sm:$0xf]
    %v80 = vld [vmem:[#allocation6 + $0x20] sm:$0xf]
    %v81 = vld [vmem:[#allocation6 + $0x24] sm:$0xf]
    %v82 = vld [vmem:[#allocation6 + $0x28] sm:$0xf]
    %v83 = vld [vmem:[#allocation6 + $0x2c] sm:$0xf]
    %v84 = vld [vmem:[#allocation6 + $0x30] sm:$0xf]
    %v85 = vld [vmem:[#allocation6 + $0x34] sm:$0xf]
    %v86 = vld [vmem:[#allocation6 + $0x38] sm:$0xf]
    %v87 = vld [vmem:[#allocation6 + $0x3c] sm:$0xf]
    %v104 = vunpack.c.l.b16 %v72
    %v105 = vunpack.c.l.b16 %v73
    %v106 = vunpack.c.l.b16 %v74
    %v107 = vunpack.c.l.b16 %v75
    %v108 = vunpack.c.l.b16 %v76
    %v109 = vunpack.c.l.b16 %v77
    %v110 = vunpack.c.l.b16 %v78
    %v111 = vunpack.c.l.b16 %v79
    %v112 = vunpack.c.l.b16 %v80
    %v113 = vunpack.c.l.b16 %v81
    %v114 = vunpack.c.l.b16 %v82
    %v115 = vunpack.c.l.b16 %v83
    %v116 = vunpack.c.l.b16 %v84
    %v117 = vunpack.c.l.b16 %v85
    %v118 = vunpack.c.l.b16 %v86
    %v119 = vunpack.c.l.b16 %v87
    %v120 = vpack.c.b16 %v105, %v104
    %v121 = vpack.c.b16 %v107, %v106
    %v122 = vpack.c.b16 %v109, %v108
    %v123 = vpack.c.b16 %v111, %v110
    %v124 = vpack.c.b16 %v113, %v112
    %v125 = vpack.c.b16 %v115, %v114
    %v126 = vpack.c.b16 %v117, %v116
    %v127 = vpack.c.b16 %v119, %v118
    %136 = vmatpush.bf16.msra.mxu0 %v127
    %137 = vmatpush.bf16.msra.mxu0 %v126
    %138 = vmatpush.bf16.msra.mxu0 %v125
    %139 = vmatpush.bf16.msra.mxu0 %v124
    %140 = vmatpush.bf16.msra.mxu0 %v123
    %141 = vmatpush.bf16.msra.mxu0 %v122
    %142 = vmatpush.bf16.msra.mxu0 %v121
    %143 = vmatpush.bf16.msra.mxu0 %v120
    %144 = vmatmul.bf16.gmra.mxu0 %v71
    %v145 = vpop.f32.mrf.mxu0
    %v146 = vadd.f32 0.0, %v145
    %v147 = vpop.f32.mrf.mxu0
    %148 = vdwg.mxu0
    %v149 = vadd.f32 %v70, %v146
    %150 = vst [vmem:[#allocation2] sm:$0xff] %v149
    // Predicated region
    $region34: #{tpu_custom_call.1} parent=1 // pred_check
      %p151 = pneg %p61
    $region35: #{tpu_custom_call.1} parent=1 // pred_check_branch
      %153 = sbr.rel (%p151) target = $region37
    $region36: #{tpu_custom_call.1} parent=1 // pred_region
      %v154 = vld [vmem:[#allocation2] sm:$0xff]
      %v155 = vtanh.pop %v154
      %v156 = vld [vmem:[#allocation8] sm:$0xff]
      %v157 = vadd.f32 %v155, %v156
      %158 = vst [vmem:[#allocation9] sm:$0xff] %v157
    $region37: #{tpu_custom_call.1} parent=1 // pred_fallthru
      _
    // Predicated region
    $region38: #{tpu_custom_call.1} parent=1 // pred_check
      _
    $region39: #{tpu_custom_call.1} parent=1 // pred_check_branch
      %160 = sbr.rel (0) target = $region41
    $region40: #{tpu_custom_call.1} parent=1 // pred_region
      %162 = vsyncadd [#allocation5], 0
      %s164 = sshll.u32 [#allocation9], 4
      %s165 = int_to_ptr.vmem [resolvable:$true] %s164
      %s166 = sshll.u32 %s4, 4
      %s167 = int_to_ptr.hbm [resolvable:$true] %s166
      %169 = dma.vmem_to_hbm [thread:$0]  %s165, 128, %s167, [#allocation5]
    $region41: #{tpu_custom_call.1} parent=1 // pred_fallthru
      _
    // Predicated region
    $region42: #{tpu_custom_call.1} parent=1 // pred_check
      _
    $region43: #{tpu_custom_call.1} parent=1 // pred_check_branch
      %171 = sbr.rel (0) target = $region45
    $region44: #{tpu_custom_call.1} parent=1 // pred_region
      %173 = dma.done [#allocation5], 128
    $region45: #{tpu_custom_call.1} parent=1 // pred_fallthru
      _
    %174 = vsyncpa [#allocation4], 1
    %175 = vsyncpa [#allocation7], 1
    %176 = vsyncpa [#allocation5], 1

</llo_original>
